<compile_context>
chip_gen: v5e
topology: v5e:2x2
jax: 0.10.0
libtpu: 0.0.40
codegen_flags: <defaults>
</compile_context>

<pallas_src>
import functools

import jax
import jax.numpy as jnp
import numpy as np
from jax.experimental import pallas as pl
from jax.experimental.pallas import tpu as pltpu

MASK_THRESHOLD = 5e-3  # piggyback Binarizer default threshold


def _round_up(x, m):
    return ((x + m - 1) // m) * m


def _pad_axis(a, axis, new_size):
    pad = [(0, 0)] * a.ndim
    pad[axis] = (0, new_size - a.shape[axis])
    return jnp.pad(a, pad)


def _gate_pad_cols(w3h, H, Hp):
    """(R, 3H) -> (R, 3Hp): zero-pad each gate block to a 128-lane boundary."""
    R = w3h.shape[0]
    return _pad_axis(w3h.reshape(R, 3, H), 2, Hp).reshape(R, 3 * Hp)


def _vmem_estimate(Tc, Bp, I, Hp, Op):
    """Rough resident VMEM bytes per grid step (f32, double-buffered I/O)."""
    f = 4
    xb = 2 * Tc * Bp * I * f                         # input chunk (x2 buffers)
    ob = 2 * Tc * Bp * Op * f                        # output chunk (x2 buffers)
    wt = 2 * (I * 3 * Hp + Hp * 3 * Hp + 4 * Hp + Hp * Op + Op) * f  # weights
    sc = (Bp * Hp + Tc * Bp * 3 * Hp + Tc * Bp * Hp) * f            # scratch
    return xb + ob + wt + sc


def _pick_time_chunk(S, Bp, I, Hp, Op, budget_bytes, min_steps=4):
    """Largest divisor of S giving >= min_steps grid steps under the budget."""
    cap = max(1, S // min_steps) if S >= min_steps else S
    best = 1
    for tc in range(1, cap + 1):
        if S % tc == 0 and _vmem_estimate(tc, Bp, I, Hp, Op) <= budget_bytes:
            best = tc
    return best


def _gru_chunk_kernel(
    x_ref,      # (Tc, Bp, I)    time-major input chunk
    wih_ref,    # (I, 3Hp)       pre-masked W_ih, gate-padded (r|z|n)
    whh_ref,    # (Hp, 3Hp)      pre-masked W_hh, gate-padded
    bih_ref,    # (1, 3Hp)       b_ih with b_hh's r/z slices folded in
    bhn_ref,    # (1, Hp)        n-gate recurrent bias (inside r*(...))
    fcw_ref,    # (Hp, Op)       pre-masked classifier weight (padded)
    fcb_ref,    # (1, Op)
    o_ref,      # (Tc*Bp, Op)    lane-dense output chunk
    h_ref,      # (Bp, Hp)       scratch: hidden state carried across chunks
    gi_ref,     # (Tc*Bp, 3Hp)   scratch: chunk input projection
    hbuf_ref,   # (Tc*Bp, Hp)    scratch: chunk hidden states (classifier input)
    *,
    hp: int,
    tc: int,
    b: int,
):
    c = pl.program_id(0)

    @pl.when(c == 0)
    def _():
        h_ref[...] = jnp.zeros_like(h_ref)

    # Batched input projection for the whole chunk, stored to VMEM scratch so it
    # is not a live traced value across the recurrence.
    x2 = x_ref[...].reshape(tc * b, x_ref.shape[-1])
    gi_ref[...] = (
        jnp.dot(x2, wih_ref[...], preferred_element_type=jnp.float32)
        + bih_ref[...]
    )

    whh = whh_ref[...]
    bhn = bhn_ref[...]

    # Sequential GRU recurrence (PyTorch gate order r, z, n).  Gate slices are
    # 128-lane aligned (hp is a multiple of 128), so they are free.
    # TODO(synk): W_hh could stay staged in the MXU via matmul_push_rhs/acc_lhs.
    def step(j, h):
        row = pl.multiple_of(j * b, 8)
        gi_t = gi_ref[pl.ds(row, b), :]                                 # (B,3Hp)
        gh = jnp.dot(h, whh, preferred_element_type=jnp.float32)        # (B,3Hp)
        r = jax.nn.sigmoid(gi_t[:, 0:hp] + gh[:, 0:hp])
        z = jax.nn.sigmoid(gi_t[:, hp:2 * hp] + gh[:, hp:2 * hp])
        n = jnp.tanh(gi_t[:, 2 * hp:3 * hp] + r * (gh[:, 2 * hp:3 * hp] + bhn))
        h = (1.0 - z) * n + z * h
        hbuf_ref[pl.ds(row, b), :] = h
        return h

    h_ref[...] = jax.lax.fori_loop(0, tc, step, h_ref[...], unroll=min(tc, 8))

    # Deferred classifier: one lane-dense (Tc*B, Hp) @ (Hp, Op) matmul per chunk,
    # written as a single unmasked 128-lane-wide store.
    o_ref[...] = (
        jnp.dot(hbuf_ref[...], fcw_ref[...], preferred_element_type=jnp.float32)
        + fcb_ref[...]
    )


def modified_rnn_forward(x_bsi, params, *, hidden_size, time_chunk=None):
    """x_bsi: (batch, seq_len, input_size) f32 -> (batch, seq_len, output_size)."""
    B, S, I = x_bsi.shape
    H = hidden_size
    O = params["fc_w"].shape[1]

    Hp = _round_up(H, 128)          # gate-aligned hidden width
    Op = _round_up(O, 128)          # lane-dense output width
    Bp = max(8, _round_up(B, 8))    # sublane-aligned batch

    # --- piggyback masking, hoisted out of the kernel (done once) -----------
    w_ih = params["w_ih"] * (params["m_ih"] > MASK_THRESHOLD)
    w_hh = params["w_hh"] * (params["m_hh"] > MASK_THRESHOLD)
    fc_w = params["fc_w"] * (params["m_fc"] > MASK_THRESHOLD)

    # --- fold r/z recurrent biases into the input bias ----------------------
    # (the n-gate recurrent bias stays separate: it is multiplied by r)
    b_ih, b_hh = params["b_ih"], params["b_hh"]
    b_comb = b_ih + jnp.concatenate(
        [b_hh[:, : 2 * H], jnp.zeros((1, H), jnp.float32)], axis=1)
    b_hn = b_hh[:, 2 * H: 3 * H]

    # --- gate-aligned, zero-padded layouts (padded cols provably stay 0) ----
    wih_p = _gate_pad_cols(w_ih, H, Hp)                       # (I, 3Hp)
    whh_p = _gate_pad_cols(_pad_axis(w_hh, 0, Hp), H, Hp)     # (Hp, 3Hp)
    bih_p = _gate_pad_cols(b_comb, H, Hp)                     # (1, 3Hp)
    bhn_p = _pad_axis(b_hn, 1, Hp)                            # (1, Hp)
    fcw_p = _pad_axis(_pad_axis(fc_w, 0, Hp), 1, Op)          # (Hp, Op)
    fcb_p = _pad_axis(params["fc_b"], 1, Op)                  # (1, Op)

    # --- batch pad + time-major input ---------------------------------------
    x_p = _pad_axis(x_bsi, 0, Bp)                             # (Bp, S, I)
    x_sbi = jnp.transpose(x_p, (1, 0, 2))                     # (S, Bp, I)

    # --- time chunking: keep >= 4 grid steps, respect a v7x-safe VMEM budget -
    budget = 24 * 1024 * 1024
    if time_chunk is None:
        Tc = _pick_time_chunk(S, Bp, I, Hp, Op, budget)
    else:
        Tc = time_chunk
        if S % Tc != 0:
            raise ValueError(f"time_chunk={Tc} must divide seq_len={S}")
    n_chunks = S // Tc

    est = _vmem_estimate(Tc, Bp, I, Hp, Op)
    vmem_limit = int(min(max(2 * est, 32 * 1024 * 1024), 48 * 1024 * 1024))

    kernel = functools.partial(_gru_chunk_kernel, hp=Hp, tc=Tc, b=Bp)
    full2d = lambda c: (0, 0)

    out2d = pl.pallas_call(
        kernel,
        out_shape=jax.ShapeDtypeStruct((S * Bp, Op), jnp.float32),
        grid_spec=pltpu.PrefetchScalarGridSpec(
            num_scalar_prefetch=0,
            grid=(n_chunks,),
            in_specs=[
                pl.BlockSpec((Tc, Bp, I), lambda c: (c, 0, 0)),   # x chunk
                pl.BlockSpec((I, 3 * Hp), full2d),                # W_ih (masked)
                pl.BlockSpec((Hp, 3 * Hp), full2d),               # W_hh (masked)
                pl.BlockSpec((1, 3 * Hp), full2d),                # folded b_ih
                pl.BlockSpec((1, Hp), full2d),                    # b_hh (n gate)
                pl.BlockSpec((Hp, Op), full2d),                   # fc_w (masked)
                pl.BlockSpec((1, Op), full2d),                    # fc_b
            ],
            out_specs=pl.BlockSpec((Tc * Bp, Op), lambda c: (c, 0)),
            scratch_shapes=[
                pltpu.VMEM((Bp, Hp), jnp.float32),            # carried hidden
                pltpu.VMEM((Tc * Bp, 3 * Hp), jnp.float32),   # chunk gi
                pltpu.VMEM((Tc * Bp, Hp), jnp.float32),       # chunk hiddens
            ],
        ),
        compiler_params=pltpu.CompilerParams(
            dimension_semantics=("arbitrary",),  # recurrence: must be sequential
            vmem_limit_bytes=vmem_limit,
        ),
    )(x_sbi, wih_p, whh_p, bih_p, bhn_p, fcw_p, fcb_p)

    out = out2d.reshape(S, Bp, Op)[:, :B, :O]   # drop batch/lane padding
    return jnp.transpose(out, (1, 0, 2))        # back to (batch, seq, output)


def _reference_forward(x_bsi, params, *, hidden_size):
    """Pure-JAX reference (same math) for correctness check."""
    H = hidden_size
    wih = params["w_ih"] * (params["m_ih"] > MASK_THRESHOLD)
    whh = params["w_hh"] * (params["m_hh"] > MASK_THRESHOLD)
    fcw = params["fc_w"] * (params["m_fc"] > MASK_THRESHOLD)
    bih, bhh, fcb = params["b_ih"], params["b_hh"], params["fc_b"]

    B, S, I = x_bsi.shape
    h = jnp.zeros((B, H), jnp.float32)
    outs = []
    for t in range(S):
        x_t = x_bsi[:, t, :]
        gi = x_t @ wih + bih
        gh = h @ whh + bhh
        r = jax.nn.sigmoid(gi[:, :H] + gh[:, :H])
        z = jax.nn.sigmoid(gi[:, H:2 * H] + gh[:, H:2 * H])
        n = jnp.tanh(gi[:, 2 * H:] + r * gh[:, 2 * H:])
        h = (1.0 - z) * n + z * h
        outs.append(h @ fcw + fcb)
    return jnp.stack(outs, axis=1)


def init_params(key, *, input_size, hidden_size, output_size, mask_scale=1e-2):
    """Deterministic synthetic 'pretrained' weights + piggyback real-valued masks."""
    ks = jax.random.split(key, 9)
    H, I, O = hidden_size, input_size, output_size
    k = 1.0 / np.sqrt(H)
    u = lambda kk, shape, lo, hi: jax.random.uniform(kk, shape, jnp.float32, lo, hi)
    return {
        # pretrained GRU weights, stored transposed for x @ W (gates r|z|n)
        "w_ih": u(ks[0], (I, 3 * H), -k, k),
        "w_hh": u(ks[1], (H, 3 * H), -k, k),
        "b_ih": u(ks[2], (1, 3 * H), -k, k),
        "b_hh": u(ks[3], (1, 3 * H), -k, k),
        # classifier
        "fc_w": u(ks[4], (H, O), -k, k),
        "fc_b": u(ks[5], (1, O), -k, k),
        # piggyback real-valued masks, mask_init='uniform', scale=1e-2
        "m_ih": u(ks[6], (I, 3 * H), -mask_scale, mask_scale),
        "m_hh": u(ks[7], (H, 3 * H), -mask_scale, mask_scale),
        "m_fc": u(ks[8], (H, O), -mask_scale, mask_scale),
    }


if __name__ == "__main__":
    # Small shapes consistent with the module's forward: (batch, seq_len, input_size)
    BATCH, SEQ, INPUT, HIDDEN, OUTPUT = 8, 8, 4, 32, 4

    key = jax.random.PRNGKey(0)
    k_x, k_p = jax.random.split(key)
    x = jax.random.normal(k_x, (BATCH, SEQ, INPUT), jnp.float32)
    params = init_params(k_p, input_size=INPUT, hidden_size=HIDDEN, output_size=OUTPUT)

    fwd = jax.jit(functools.partial(modified_rnn_forward, hidden_size=HIDDEN))
    out = jax.block_until_ready(fwd(x, params))

    ref = jax.block_until_ready(_reference_forward(x, params, hidden_size=HIDDEN))
    assert out.shape == (BATCH, SEQ, OUTPUT)
    np.testing.assert_allclose(np.asarray(out), np.asarray(ref), rtol=1e-5, atol=1e-5)

    print("KERNEL_OK")
</pallas_src>

<mosaic_0001>
module attributes {stable_mosaic.version = 11 : i64} {
  func.func @_gru_chunk_kernel(%arg0: i32, %arg1: memref<2x8x4xf32, #tpu.memory_space<vmem>>, %arg2: memref<4x384xf32, #tpu.memory_space<vmem>>, %arg3: memref<128x384xf32, #tpu.memory_space<vmem>>, %arg4: memref<1x384xf32, #tpu.memory_space<vmem>>, %arg5: memref<1x128xf32, #tpu.memory_space<vmem>>, %arg6: memref<128x128xf32, #tpu.memory_space<vmem>>, %arg7: memref<1x128xf32, #tpu.memory_space<vmem>>, %arg8: memref<16x128xf32, #tpu.memory_space<vmem>>, %arg9: memref<8x128xf32, #tpu.memory_space<vmem>>, %arg10: memref<16x384xf32, #tpu.memory_space<vmem>>, %arg11: memref<16x128xf32, #tpu.memory_space<vmem>>) attributes {dimension_semantics = [#tpu.dimension_semantics<arbitrary>], iteration_bounds = array<i64: 4>, scalar_prefetch = 0 : i64, scratch_operands = 3 : i64, tpu.core_type = #tpu.core_type<tc>, window_params = [{transform_indices = @transform_0, window_bounds = array<i64: 2, 8, 4>}, {pipeline_mode = #tpu.pipeline_mode<synchronous>, transform_indices = @transform_1, window_bounds = array<i64: 4, 384>}, {pipeline_mode = #tpu.pipeline_mode<synchronous>, transform_indices = @transform_2, window_bounds = array<i64: 128, 384>}, {pipeline_mode = #tpu.pipeline_mode<synchronous>, transform_indices = @transform_3, window_bounds = array<i64: 1, 384>}, {pipeline_mode = #tpu.pipeline_mode<synchronous>, transform_indices = @transform_4, window_bounds = array<i64: 1, 128>}, {pipeline_mode = #tpu.pipeline_mode<synchronous>, transform_indices = @transform_5, window_bounds = array<i64: 128, 128>}, {pipeline_mode = #tpu.pipeline_mode<synchronous>, transform_indices = @transform_6, window_bounds = array<i64: 1, 128>}, {transform_indices = @transform_7, window_bounds = array<i64: 16, 128>}]} {
    %c0_i32 = arith.constant 0 : i32
    %0 = arith.cmpi eq, %arg0, %c0_i32 : i32
    %1 = arith.extui %0 : i1 to i32
    %c0_i32_0 = arith.constant 0 : i32
    %2 = arith.cmpi ne, %1, %c0_i32_0 : i32
    scf.if %2 {
      %cst_40 = arith.constant 0.000000e+00 : f32
      %92 = vector.broadcast %cst_40 : f32 to vector<8x128xf32>
      %c0_41 = arith.constant 0 : index
      %c0_42 = arith.constant 0 : index
      %93 = vector.load %arg9[%c0_41, %c0_42] : memref<8x128xf32, #tpu.memory_space<vmem>>, vector<8x128xf32>
      tpu.vector_store %arg9[%c0_41, %c0_42], %92 {strides = array<i32>} : memref<8x128xf32, #tpu.memory_space<vmem>>, vector<8x128xf32>,
    } else {
    }
    %c0 = arith.constant 0 : index
    %c0_1 = arith.constant 0 : index
    %c0_2 = arith.constant 0 : index
    %3 = vector.load %arg1[%c0, %c0_1, %c0_2] : memref<2x8x4xf32, #tpu.memory_space<vmem>>, vector<2x8x4xf32>
    %4 = vector.shape_cast %3 : vector<2x8x4xf32> to vector<16x4xf32>
    %c0_3 = arith.constant 0 : index
    %c0_4 = arith.constant 0 : index
    %5 = vector.load %arg2[%c0_3, %c0_4] : memref<4x384xf32, #tpu.memory_space<vmem>>, vector<4x384xf32>
    %cst = arith.constant dense<0.000000e+00> : vector<16x384xf32>
    %6 = tpu.matmul %4, %5, %cst {dimension_numbers = #tpu.dot_dimension_numbers<[1], [0], [0], [1], [0, 0, 1, 1], [], []>} : vector<16x4xf32>, vector<4x384xf32>, vector<16x384xf32> -> vector<16x384xf32>
    %c0_5 = arith.constant 0 : index
    %c0_6 = arith.constant 0 : index
    %7 = vector.load %arg4[%c0_5, %c0_6] : memref<1x384xf32, #tpu.memory_space<vmem>>, vector<1x384xf32>
    %8 = vector.broadcast %7 : vector<1x384xf32> to vector<16x384xf32>
    %9 = arith.addf %6, %8 : vector<16x384xf32>
    %c0_7 = arith.constant 0 : index
    %c0_8 = arith.constant 0 : index
    %10 = vector.load %arg10[%c0_7, %c0_8] : memref<16x384xf32, #tpu.memory_space<vmem>>, vector<16x384xf32>
    tpu.vector_store %arg10[%c0_7, %c0_8], %9 {strides = array<i32>} : memref<16x384xf32, #tpu.memory_space<vmem>>, vector<16x384xf32>,
    %c0_9 = arith.constant 0 : index
    %c0_10 = arith.constant 0 : index
    %11 = vector.load %arg3[%c0_9, %c0_10] : memref<128x384xf32, #tpu.memory_space<vmem>>, vector<128x384xf32>
    %c0_11 = arith.constant 0 : index
    %c0_12 = arith.constant 0 : index
    %12 = vector.load %arg5[%c0_11, %c0_12] : memref<1x128xf32, #tpu.memory_space<vmem>>, vector<1x128xf32>
    %c0_13 = arith.constant 0 : index
    %c0_14 = arith.constant 0 : index
    %13 = vector.load %arg9[%c0_13, %c0_14] : memref<8x128xf32, #tpu.memory_space<vmem>>, vector<8x128xf32>
    %c0_i32_15 = arith.constant 0 : i32
    %c8_i32 = arith.constant 8 : i32
    %14 = arith.muli %c0_i32_15, %c8_i32 : i32
    %15 = tpu.assume_multiple %14, 8 : i32
    %16 = arith.index_cast %15 : i32 to index
    %c0_16 = arith.constant 0 : index
    %17 = vector.load %arg10[%16, %c0_16] : memref<16x384xf32, #tpu.memory_space<vmem>>, vector<8x384xf32>
    %cst_17 = arith.constant dense<0.000000e+00> : vector<8x384xf32>
    %18 = tpu.matmul %13, %11, %cst_17 {dimension_numbers = #tpu.dot_dimension_numbers<[1], [0], [0], [1], [0, 0, 1, 1], [], []>} : vector<8x128xf32>, vector<128x384xf32>, vector<8x384xf32> -> vector<8x384xf32>
    %19 = vector.extract_strided_slice %17 {offsets = [0, 0], sizes = [8, 128], strides = [1, 1]} : vector<8x384xf32> to vector<8x128xf32>
    %20 = vector.extract_strided_slice %18 {offsets = [0, 0], sizes = [8, 128], strides = [1, 1]} : vector<8x384xf32> to vector<8x128xf32>
    %21 = arith.addf %19, %20 : vector<8x128xf32>
    %22 = arith.negf %21 : vector<8x128xf32>
    %23 = math.exp %22 : vector<8x128xf32>
    %cst_18 = arith.constant 1.000000e+00 : f32
    %24 = vector.broadcast %cst_18 : f32 to vector<8x128xf32>
    %25 = arith.addf %24, %23 : vector<8x128xf32>
    %26 = arith.divf %24, %25 : vector<8x128xf32>
    %27 = vector.extract_strided_slice %17 {offsets = [0, 128], sizes = [8, 128], strides = [1, 1]} : vector<8x384xf32> to vector<8x128xf32>
    %28 = vector.extract_strided_slice %18 {offsets = [0, 128], sizes = [8, 128], strides = [1, 1]} : vector<8x384xf32> to vector<8x128xf32>
    %29 = arith.addf %27, %28 : vector<8x128xf32>
    %30 = arith.negf %29 : vector<8x128xf32>
    %31 = math.exp %30 : vector<8x128xf32>
    %cst_19 = arith.constant 1.000000e+00 : f32
    %32 = vector.broadcast %cst_19 : f32 to vector<8x128xf32>
    %33 = arith.addf %32, %31 : vector<8x128xf32>
    %34 = arith.divf %32, %33 : vector<8x128xf32>
    %35 = vector.extract_strided_slice %17 {offsets = [0, 256], sizes = [8, 128], strides = [1, 1]} : vector<8x384xf32> to vector<8x128xf32>
    %36 = vector.extract_strided_slice %18 {offsets = [0, 256], sizes = [8, 128], strides = [1, 1]} : vector<8x384xf32> to vector<8x128xf32>
    %37 = vector.broadcast %12 : vector<1x128xf32> to vector<8x128xf32>
    %38 = arith.addf %36, %37 : vector<8x128xf32>
    %39 = arith.mulf %26, %38 : vector<8x128xf32>
    %40 = arith.addf %35, %39 : vector<8x128xf32>
    %41 = math.tanh %40 : vector<8x128xf32>
    %cst_20 = arith.constant 1.000000e+00 : f32
    %42 = vector.broadcast %cst_20 : f32 to vector<8x128xf32>
    %43 = arith.subf %42, %34 : vector<8x128xf32>
    %44 = arith.mulf %43, %41 : vector<8x128xf32>
    %45 = arith.mulf %34, %13 : vector<8x128xf32>
    %46 = arith.addf %44, %45 : vector<8x128xf32>
    %47 = arith.index_cast %15 : i32 to index
    %c0_21 = arith.constant 0 : index
    %48 = vector.load %arg11[%47, %c0_21] : memref<16x128xf32, #tpu.memory_space<vmem>>, vector<8x128xf32>
    tpu.vector_store %arg11[%47, %c0_21], %46 {strides = array<i32>} : memref<16x128xf32, #tpu.memory_space<vmem>>, vector<8x128xf32>,
    %c1_i32 = arith.constant 1 : i32
    %c8_i32_22 = arith.constant 8 : i32
    %49 = arith.muli %c1_i32, %c8_i32_22 : i32
    %50 = tpu.assume_multiple %49, 8 : i32
    %51 = arith.index_cast %50 : i32 to index
    %c0_23 = arith.constant 0 : index
    %52 = vector.load %arg10[%51, %c0_23] : memref<16x384xf32, #tpu.memory_space<vmem>>, vector<8x384xf32>
    %cst_24 = arith.constant dense<0.000000e+00> : vector<8x384xf32>
    %53 = tpu.matmul %46, %11, %cst_24 {dimension_numbers = #tpu.dot_dimension_numbers<[1], [0], [0], [1], [0, 0, 1, 1], [], []>} : vector<8x128xf32>, vector<128x384xf32>, vector<8x384xf32> -> vector<8x384xf32>
    %54 = vector.extract_strided_slice %52 {offsets = [0, 0], sizes = [8, 128], strides = [1, 1]} : vector<8x384xf32> to vector<8x128xf32>
    %55 = vector.extract_strided_slice %53 {offsets = [0, 0], sizes = [8, 128], strides = [1, 1]} : vector<8x384xf32> to vector<8x128xf32>
    %56 = arith.addf %54, %55 : vector<8x128xf32>
    %57 = arith.negf %56 : vector<8x128xf32>
    %58 = math.exp %57 : vector<8x128xf32>
    %cst_25 = arith.constant 1.000000e+00 : f32
    %59 = vector.broadcast %cst_25 : f32 to vector<8x128xf32>
    %60 = arith.addf %59, %58 : vector<8x128xf32>
    %61 = arith.divf %59, %60 : vector<8x128xf32>
    %62 = vector.extract_strided_slice %52 {offsets = [0, 128], sizes = [8, 128], strides = [1, 1]} : vector<8x384xf32> to vector<8x128xf32>
    %63 = vector.extract_strided_slice %53 {offsets = [0, 128], sizes = [8, 128], strides = [1, 1]} : vector<8x384xf32> to vector<8x128xf32>
    %64 = arith.addf %62, %63 : vector<8x128xf32>
    %65 = arith.negf %64 : vector<8x128xf32>
    %66 = math.exp %65 : vector<8x128xf32>
    %cst_26 = arith.constant 1.000000e+00 : f32
    %67 = vector.broadcast %cst_26 : f32 to vector<8x128xf32>
    %68 = arith.addf %67, %66 : vector<8x128xf32>
    %69 = arith.divf %67, %68 : vector<8x128xf32>
    %70 = vector.extract_strided_slice %52 {offsets = [0, 256], sizes = [8, 128], strides = [1, 1]} : vector<8x384xf32> to vector<8x128xf32>
    %71 = vector.extract_strided_slice %53 {offsets = [0, 256], sizes = [8, 128], strides = [1, 1]} : vector<8x384xf32> to vector<8x128xf32>
    %72 = vector.broadcast %12 : vector<1x128xf32> to vector<8x128xf32>
    %73 = arith.addf %71, %72 : vector<8x128xf32>
    %74 = arith.mulf %61, %73 : vector<8x128xf32>
    %75 = arith.addf %70, %74 : vector<8x128xf32>
    %76 = math.tanh %75 : vector<8x128xf32>
    %cst_27 = arith.constant 1.000000e+00 : f32
    %77 = vector.broadcast %cst_27 : f32 to vector<8x128xf32>
    %78 = arith.subf %77, %69 : vector<8x128xf32>
    %79 = arith.mulf %78, %76 : vector<8x128xf32>
    %80 = arith.mulf %69, %46 : vector<8x128xf32>
    %81 = arith.addf %79, %80 : vector<8x128xf32>
    %82 = arith.index_cast %50 : i32 to index
    %c0_28 = arith.constant 0 : index
    %83 = vector.load %arg11[%82, %c0_28] : memref<16x128xf32, #tpu.memory_space<vmem>>, vector<8x128xf32>
    tpu.vector_store %arg11[%82, %c0_28], %81 {strides = array<i32>} : memref<16x128xf32, #tpu.memory_space<vmem>>, vector<8x128xf32>,
    %c2_i32 = arith.constant 2 : i32
    %c0_29 = arith.constant 0 : index
    %c0_30 = arith.constant 0 : index
    %84 = vector.load %arg9[%c0_29, %c0_30] : memref<8x128xf32, #tpu.memory_space<vmem>>, vector<8x128xf32>
    tpu.vector_store %arg9[%c0_29, %c0_30], %81 {strides = array<i32>} : memref<8x128xf32, #tpu.memory_space<vmem>>, vector<8x128xf32>,
    %c0_31 = arith.constant 0 : index
    %c0_32 = arith.constant 0 : index
    %85 = vector.load %arg11[%c0_31, %c0_32] : memref<16x128xf32, #tpu.memory_space<vmem>>, vector<16x128xf32>
    %c0_33 = arith.constant 0 : index
    %c0_34 = arith.constant 0 : index
    %86 = vector.load %arg6[%c0_33, %c0_34] : memref<128x128xf32, #tpu.memory_space<vmem>>, vector<128x128xf32>
    %cst_35 = arith.constant dense<0.000000e+00> : vector<16x128xf32>
    %87 = tpu.matmul %85, %86, %cst_35 {dimension_numbers = #tpu.dot_dimension_numbers<[1], [0], [0], [1], [0, 0, 1, 1], [], []>} : vector<16x128xf32>, vector<128x128xf32>, vector<16x128xf32> -> vector<16x128xf32>
    %c0_36 = arith.constant 0 : index
    %c0_37 = arith.constant 0 : index
    %88 = vector.load %arg7[%c0_36, %c0_37] : memref<1x128xf32, #tpu.memory_space<vmem>>, vector<1x128xf32>
    %89 = vector.broadcast %88 : vector<1x128xf32> to vector<16x128xf32>
    %90 = arith.addf %87, %89 : vector<16x128xf32>
    %c0_38 = arith.constant 0 : index
    %c0_39 = arith.constant 0 : index
    %91 = vector.load %arg8[%c0_38, %c0_39] : memref<16x128xf32, #tpu.memory_space<vmem>>, vector<16x128xf32>
    tpu.vector_store %arg8[%c0_38, %c0_39], %90 {strides = array<i32>} : memref<16x128xf32, #tpu.memory_space<vmem>>, vector<16x128xf32>,
    return
  }
  func.func @transform_0(%arg0: i32) -> (i32, i32, i32) {
    %c0_i32 = arith.constant 0 : i32
    %c0_i32_0 = arith.constant 0 : i32
    %c0_i32_1 = arith.constant 0 : i32
    return %arg0, %c0_i32, %c0_i32_0 : i32, i32, i32
  }
  func.func @transform_1(%arg0: i32) -> (i32, i32) {
    %c0_i32 = arith.constant 0 : i32
    %c0_i32_0 = arith.constant 0 : i32
    %c0_i32_1 = arith.constant 0 : i32
    return %c0_i32, %c0_i32_0 : i32, i32
  }
  func.func @transform_2(%arg0: i32) -> (i32, i32) {
    %c0_i32 = arith.constant 0 : i32
    %c0_i32_0 = arith.constant 0 : i32
    %c0_i32_1 = arith.constant 0 : i32
    return %c0_i32, %c0_i32_0 : i32, i32
  }
  func.func @transform_3(%arg0: i32) -> (i32, i32) {
    %c0_i32 = arith.constant 0 : i32
    %c0_i32_0 = arith.constant 0 : i32
    %c0_i32_1 = arith.constant 0 : i32
    return %c0_i32, %c0_i32_0 : i32, i32
  }
  func.func @transform_4(%arg0: i32) -> (i32, i32) {
    %c0_i32 = arith.constant 0 : i32
    %c0_i32_0 = arith.constant 0 : i32
    %c0_i32_1 = arith.constant 0 : i32
    return %c0_i32, %c0_i32_0 : i32, i32
  }
  func.func @transform_5(%arg0: i32) -> (i32, i32) {
    %c0_i32 = arith.constant 0 : i32
    %c0_i32_0 = arith.constant 0 : i32
    %c0_i32_1 = arith.constant 0 : i32
    return %c0_i32, %c0_i32_0 : i32, i32
  }
  func.func @transform_6(%arg0: i32) -> (i32, i32) {
    %c0_i32 = arith.constant 0 : i32
    %c0_i32_0 = arith.constant 0 : i32
    %c0_i32_1 = arith.constant 0 : i32
    return %c0_i32, %c0_i32_0 : i32, i32
  }
  func.func @transform_7(%arg0: i32) -> (i32, i32) {
    %c0_i32 = arith.constant 0 : i32
    %c0_i32_0 = arith.constant 0 : i32
    return %arg0, %c0_i32 : i32, i32
  }
}

</mosaic_0001>

<llo_original>
// kernel: modified_rnn_forward.1
$region0: #{modified_rnn_forward.1}
  #allocation0 [shape = 'u32[]', space=smem, size = 0x4, offset = 0x4, fixed_abs, tag = 'smem constant byte address 0x4 - core index']
  #allocation1 [shape = 'u32[72,128]{1,0:T(1,128)}', space=vmem, size = 0x9000, scoped, tag = 'internal scratch']
  #allocation2 [shape = 'f32[8,128]{1,0:T(8,128)}', space=vmem, size = 0x1000, scoped, tag = 'scratch operand']
  #allocation3 [shape = 'f32[16,384]{1,0:T(8,128)}', space=vmem, size = 0x6000, scoped, tag = 'scratch operand']
  #allocation4 [shape = 'f32[16,128]{1,0:T(8,128)}', space=vmem, size = 0x2000, scoped, tag = 'scratch operand']
  %s0 = inlined_call_operand.vmem [shape: f32[8,8,4], index: 0, kind: input, shape index: {}]
  %s1 = inlined_call_operand.vmem [shape: f32[4,384], index: 1, kind: input, shape index: {}]
  %s2 = inlined_call_operand.vmem [shape: f32[128,384], index: 2, kind: input, shape index: {}]
  %s3 = inlined_call_operand.vmem [shape: f32[1,384], index: 3, kind: input, shape index: {}]
  %s4 = inlined_call_operand.vmem [shape: f32[1,128], index: 4, kind: input, shape index: {}]
  %s5 = inlined_call_operand.vmem [shape: f32[128,128], index: 5, kind: input, shape index: {}]
  %s6 = inlined_call_operand.vmem [shape: f32[1,128], index: 6, kind: input, shape index: {}]
  %s7 = inlined_call_operand.vmem [shape: f32[64,128], index: 7, kind: output, shape index: {}]
  %s8 = sld [smem:[#allocation0]]
  $region65: #{modified_rnn_forward.1} parent=0
    _
  %s10 = ssub.s32 1, %s8
  %s11 = scalar_select 0, %s10, %s8
  loop: start=0, step=1, limit=6
  $region2: #{modified_rnn_forward.1} parent=0 // loop_pre_header
    _
  $region3: #{modified_rnn_forward.1} parent=0 // loop_header
    %s13 = sphi 0, %s17
    %p14 = scmp.ge.s32.totalorder %s13, 6
    %s23 = sphi 0, %s25
    %s26 = sphi 0, %s23
    %s27 = sphi 0, %s26
    %s43 = sphi 0, %s27
    %s47 = sphi 0, %s47
    %s49 = sphi 0, %s47
    %s50 = sphi 0, %s49
    %s64 = sphi 0, %s50
    %s68 = sphi 0, %s68
    %s70 = sphi 0, %s68
    %s71 = sphi 0, %s70
    %s85 = sphi 0, %s71
    %s89 = sphi 0, %s89
    %s91 = sphi 0, %s89
    %s92 = sphi 0, %s91
    %s106 = sphi 0, %s92
    %s110 = sphi 0, %s110
    %s112 = sphi 0, %s110
    %s113 = sphi 0, %s112
    %s127 = sphi 0, %s113
    %s131 = sphi 0, %s131
    %s133 = sphi 0, %s131
    %s134 = sphi 0, %s133
    %s148 = sphi 0, %s134
    %s152 = sphi 0, %s152
    %s154 = sphi 0, %s152
    %s155 = sphi 0, %s154
    %s169 = sphi 0, %s155
    %s175 = sphi 0, %s177
    %s178 = sphi 0, %s175
    %s179 = sphi 0, %s178
    %s195 = sphi 0, %s179
  $region4: #{modified_rnn_forward.1} parent=0 // loop_header_branch
    %16 = sbr.rel (%p14) target = $region8
  $region5: #{modified_rnn_forward.1} parent=0 // loop_body
    %s18 = ssub.s32 %s13, 1
    %s19 = ssub.s32 %s13, 2
    %s20 = sadd.s32 %s13, 1
    %s21 = ssub.s32 %s13, %s20
    %p22 = scmp.eq.s32.totalorder %s21, 0
    %s24 = sadd.s32 %s23, 1
    %s25 = scalar_select %p22, %s23, %s24
    %p28 = pneg %p22
    %p29 = scmp.eq.s32.totalorder %s13, 3
    %p30 = por %p28, %p29
    %p31 = scmp.ne.s32.totalorder %s23, %s26
    %p32 = scmp.eq.s32.totalorder %s13, 0
    %p33 = por %p31, %p32
    %p34 = scmp.ne.s32.totalorder %s23, %s26
    %p35 = scmp.eq.s32.totalorder %s18, 3
    %p36 = por %p34, %p35
    %p37 = scmp.ne.s32.totalorder %s26, %s27
    %p38 = scmp.eq.s32.totalorder %s18, 0
    %p39 = por %p37, %p38
    %p40 = scmp.ne.s32.totalorder %s26, %s27
    %p41 = scmp.eq.s32.totalorder %s19, 3
    %p42 = por %p40, %p41
    %p44 = scmp.ne.s32.totalorder %s27, %s43
    %p45 = scmp.eq.s32.totalorder %s19, 0
    %p46 = por %p44, %p45
    %s48 = sadd.s32 %s47, 1
    %p51 = scmp.eq.s32.totalorder %s13, 3
    %p52 = scmp.ne.s32.totalorder %s47, %s49
    %p53 = scmp.eq.s32.totalorder %s13, 0
    %p54 = por %p52, %p53
    %p55 = scmp.ne.s32.totalorder %s47, %s49
    %p56 = scmp.eq.s32.totalorder %s18, 3
    %p57 = por %p55, %p56
    %p58 = scmp.ne.s32.totalorder %s49, %s50
    %p59 = scmp.eq.s32.totalorder %s18, 0
    %p60 = por %p58, %p59
    %p61 = scmp.ne.s32.totalorder %s49, %s50
    %p62 = scmp.eq.s32.totalorder %s19, 3
    %p63 = por %p61, %p62
    %p65 = scmp.ne.s32.totalorder %s50, %s64
    %p66 = scmp.eq.s32.totalorder %s19, 0
    %p67 = por %p65, %p66
    %s69 = sadd.s32 %s68, 1
    %p72 = scmp.eq.s32.totalorder %s13, 3
    %p73 = scmp.ne.s32.totalorder %s68, %s70
    %p74 = scmp.eq.s32.totalorder %s13, 0
    %p75 = por %p73, %p74
    %p76 = scmp.ne.s32.totalorder %s68, %s70
    %p77 = scmp.eq.s32.totalorder %s18, 3
    %p78 = por %p76, %p77
    %p79 = scmp.ne.s32.totalorder %s70, %s71
    %p80 = scmp.eq.s32.totalorder %s18, 0
    %p81 = por %p79, %p80
    %p82 = scmp.ne.s32.totalorder %s70, %s71
    %p83 = scmp.eq.s32.totalorder %s19, 3
    %p84 = por %p82, %p83
    %p86 = scmp.ne.s32.totalorder %s71, %s85
    %p87 = scmp.eq.s32.totalorder %s19, 0
    %p88 = por %p86, %p87
    %s90 = sadd.s32 %s89, 1
    %p93 = scmp.eq.s32.totalorder %s13, 3
    %p94 = scmp.ne.s32.totalorder %s89, %s91
    %p95 = scmp.eq.s32.totalorder %s13, 0
    %p96 = por %p94, %p95
    %p97 = scmp.ne.s32.totalorder %s89, %s91
    %p98 = scmp.eq.s32.totalorder %s18, 3
    %p99 = por %p97, %p98
    %p100 = scmp.ne.s32.totalorder %s91, %s92
    %p101 = scmp.eq.s32.totalorder %s18, 0
    %p102 = por %p100, %p101
    %p103 = scmp.ne.s32.totalorder %s91, %s92
    %p104 = scmp.eq.s32.totalorder %s19, 3
    %p105 = por %p103, %p104
    %p107 = scmp.ne.s32.totalorder %s92, %s106
    %p108 = scmp.eq.s32.totalorder %s19, 0
    %p109 = por %p107, %p108
    %s111 = sadd.s32 %s110, 1
    %p114 = scmp.eq.s32.totalorder %s13, 3
    %p115 = scmp.ne.s32.totalorder %s110, %s112
    %p116 = scmp.eq.s32.totalorder %s13, 0
    %p117 = por %p115, %p116
    %p118 = scmp.ne.s32.totalorder %s110, %s112
    %p119 = scmp.eq.s32.totalorder %s18, 3
    %p120 = por %p118, %p119
    %p121 = scmp.ne.s32.totalorder %s112, %s113
    %p122 = scmp.eq.s32.totalorder %s18, 0
    %p123 = por %p121, %p122
    %p124 = scmp.ne.s32.totalorder %s112, %s113
    %p125 = scmp.eq.s32.totalorder %s19, 3
    %p126 = por %p124, %p125
    %p128 = scmp.ne.s32.totalorder %s113, %s127
    %p129 = scmp.eq.s32.totalorder %s19, 0
    %p130 = por %p128, %p129
    %s132 = sadd.s32 %s131, 1
    %p135 = scmp.eq.s32.totalorder %s13, 3
    %p136 = scmp.ne.s32.totalorder %s131, %s133
    %p137 = scmp.eq.s32.totalorder %s13, 0
    %p138 = por %p136, %p137
    %p139 = scmp.ne.s32.totalorder %s131, %s133
    %p140 = scmp.eq.s32.totalorder %s18, 3
    %p141 = por %p139, %p140
    %p142 = scmp.ne.s32.totalorder %s133, %s134
    %p143 = scmp.eq.s32.totalorder %s18, 0
    %p144 = por %p142, %p143
    %p145 = scmp.ne.s32.totalorder %s133, %s134
    %p146 = scmp.eq.s32.totalorder %s19, 3
    %p147 = por %p145, %p146
    %p149 = scmp.ne.s32.totalorder %s134, %s148
    %p150 = scmp.eq.s32.totalorder %s19, 0
    %p151 = por %p149, %p150
    %s153 = sadd.s32 %s152, 1
    %p156 = scmp.eq.s32.totalorder %s13, 3
    %p157 = scmp.ne.s32.totalorder %s152, %s154
    %p158 = scmp.eq.s32.totalorder %s13, 0
    %p159 = por %p157, %p158
    %p160 = scmp.ne.s32.totalorder %s152, %s154
    %p161 = scmp.eq.s32.totalorder %s18, 3
    %p162 = por %p160, %p161
    %p163 = scmp.ne.s32.totalorder %s154, %s155
    %p164 = scmp.eq.s32.totalorder %s18, 0
    %p165 = por %p163, %p164
    %p166 = scmp.ne.s32.totalorder %s154, %s155
    %p167 = scmp.eq.s32.totalorder %s19, 3
    %p168 = por %p166, %p167
    %p170 = scmp.ne.s32.totalorder %s155, %s169
    %p171 = scmp.eq.s32.totalorder %s19, 0
    %p172 = por %p170, %p171
    %s173 = ssub.s32 %s13, %s20
    %p174 = scmp.eq.s32.totalorder %s173, 0
    %s176 = sadd.s32 %s175, 1
    %s177 = scalar_select %p174, %s175, %s176
    %p180 = pneg %p174
    %p181 = scmp.eq.s32.totalorder %s13, 3
    %p182 = por %p180, %p181
    %p183 = scmp.ne.s32.totalorder %s175, %s178
    %p184 = scmp.eq.s32.totalorder %s13, 0
    %p185 = por %p183, %p184
    %p186 = scmp.ne.s32.totalorder %s175, %s178
    %p187 = scmp.eq.s32.totalorder %s18, 3
    %p188 = por %p186, %p187
    %p189 = scmp.ne.s32.totalorder %s178, %s179
    %p190 = scmp.eq.s32.totalorder %s18, 0
    %p191 = por %p189, %p190
    %p192 = scmp.ne.s32.totalorder %s178, %s179
    %p193 = scmp.eq.s32.totalorder %s19, 3
    %p194 = por %p192, %p193
    %p196 = scmp.ne.s32.totalorder %s179, %s195
    %p197 = scmp.eq.s32.totalorder %s19, 0
    %p198 = por %p196, %p197
    %p199 = scmp.le.s32.totalorder 1, %s13
    %p200 = scmp.lt.s32.totalorder %s13, 5
    %p201 = pnand %p199, %p200
    %p202 = pneg %p201
    // Predicated region
    $region9: #{modified_rnn_forward.1} parent=5 // pred_check
      _
    $region10: #{modified_rnn_forward.1} parent=5 // pred_check_branch
      %204 = sbr.rel (%p201) target = $region12
    $region11: #{modified_rnn_forward.1} parent=5 // pred_region
      %s205 = ssub.s32 %s13, 1
      // Predicated region
      $region13: #{modified_rnn_forward.1} parent=11 // pred_check
        %p206 = pneg %p60
      $region14: #{modified_rnn_forward.1} parent=11 // pred_check_branch
        %208 = sbr.rel (%p206) target = $region16
      $region15: #{modified_rnn_forward.1} parent=11 // pred_region
        _
      $region16: #{modified_rnn_forward.1} parent=11 // pred_fallthru
        _
      // Predicated region
      $region17: #{modified_rnn_forward.1} parent=11 // pred_check
        %p209 = pneg %p81
      $region18: #{modified_rnn_forward.1} parent=11 // pred_check_branch
        %211 = sbr.rel (%p209) target = $region20
      $region19: #{modified_rnn_forward.1} parent=11 // pred_region
        _
      $region20: #{modified_rnn_forward.1} parent=11 // pred_fallthru
        _
      // Predicated region
      $region21: #{modified_rnn_forward.1} parent=11 // pred_check
        %p212 = pneg %p102
      $region22: #{modified_rnn_forward.1} parent=11 // pred_check_branch
        %214 = sbr.rel (%p212) target = $region24
      $region23: #{modified_rnn_forward.1} parent=11 // pred_region
        _
      $region24: #{modified_rnn_forward.1} parent=11 // pred_fallthru
        _
      // Predicated region
      $region25: #{modified_rnn_forward.1} parent=11 // pred_check
        %p215 = pneg %p123
      $region26: #{modified_rnn_forward.1} parent=11 // pred_check_branch
        %217 = sbr.rel (%p215) target = $region28
      $region27: #{modified_rnn_forward.1} parent=11 // pred_region
        _
      $region28: #{modified_rnn_forward.1} parent=11 // pred_fallthru
        _
      // Predicated region
      $region29: #{modified_rnn_forward.1} parent=11 // pred_check
        %p218 = pneg %p144
      $region30: #{modified_rnn_forward.1} parent=11 // pred_check_branch
        %220 = sbr.rel (%p218) target = $region32
      $region31: #{modified_rnn_forward.1} parent=11 // pred_region
        _
      $region32: #{modified_rnn_forward.1} parent=11 // pred_fallthru
        _
      // Predicated region
      $region33: #{modified_rnn_forward.1} parent=11 // pred_check
        %p221 = pneg %p165
      $region34: #{modified_rnn_forward.1} parent=11 // pred_check_branch
        %223 = sbr.rel (%p221) target = $region36
      $region35: #{modified_rnn_forward.1} parent=11 // pred_region
        _
      $region36: #{modified_rnn_forward.1} parent=11 // pred_fallthru
        _
    $region12: #{modified_rnn_forward.1} parent=5 // pred_fallthru
      _
    %p224 = scmp.lt.s32.totalorder %s13, 4
    // Predicated region
    $region37: #{modified_rnn_forward.1} parent=5 // pred_check
      %p225 = pneg %p224
    $region38: #{modified_rnn_forward.1} parent=5 // pred_check_branch
      %227 = sbr.rel (%p225) target = $region40
    $region39: #{modified_rnn_forward.1} parent=5 // pred_region
      // Predicated region
      $region41: #{modified_rnn_forward.1} parent=39 // pred_check
        %p228 = pneg %p33
      $region42: #{modified_rnn_forward.1} parent=39 // pred_check_branch
        %230 = sbr.rel (%p228) target = $region44
      $region43: #{modified_rnn_forward.1} parent=39 // pred_region
        %s231 = smul.u32 2, %s13
        %p232 = scmp.lt.s32.totalorder %s231, 7
        %s233 = scalar_select %p232, %s231, 7
        %s234 = smul.addr %s233, 8
        %s235 = scalar_lea.vmem %s0, %s234
        %s236 = smul.u32 2, %s13
      $region44: #{modified_rnn_forward.1} parent=39 // pred_fallthru
        _
    $region40: #{modified_rnn_forward.1} parent=5 // pred_fallthru
      _
    %p237 = scmp.le.s32.totalorder 1, %s13
    %p238 = scmp.lt.s32.totalorder %s13, 5
    %p239 = pnand %p237, %p238
    %p240 = pneg %p239
    // Predicated region
    $region45: #{modified_rnn_forward.1} parent=5 // pred_check
      _
    $region46: #{modified_rnn_forward.1} parent=5 // pred_check_branch
      %242 = sbr.rel (%p239) target = $region48
    $region47: #{modified_rnn_forward.1} parent=5 // pred_region
      %s243 = ssub.s32 %s13, 1
      %s244 = smul.u32 2, %s18
      %p245 = scmp.lt.s32.totalorder %s244, 7
      %s246 = scalar_select %p245, %s244, 7
      %s247 = smul.addr %s246, 8
      %s248 = scalar_lea.vmem %s0, %s247
      %p249 = pneg %p39
      %p250 = pneg %p36
      %p251 = pneg %p60
      %p252 = pneg %p57
      %p253 = pneg %p81
      %p254 = pneg %p78
      %p255 = pneg %p102
      %p256 = pneg %p99
      %p257 = pneg %p123
      %p258 = pneg %p120
      %p259 = pneg %p144
      %p260 = pneg %p141
      %p261 = pneg %p165
      %p262 = pneg %p162
      %p263 = pneg %p191
      %p264 = pneg %p188
      %s265 = smul.u32 2, %s18
      %p266 = scmp.lt.s32.totalorder %s265, 7
      %s267 = scalar_select %p266, %s265, 7
      %s268 = smul.addr %s267, 8
      %s269 = scalar_lea.vmem %s7, %s268
      %s270 = smul.u32 2, %s18
      %p271 = scmp.lt.s32.totalorder %s270, 7
      %s272 = scalar_select %p271, %s270, 7
      %s273 = smul.addr %s272, 8
      %s274 = scalar_lea.vmem %s0, %s273
      %s275 = smul.u32 2, %s18
      %s276 = smul.u32 2, %s18
      %p277 = scmp.lt.s32.totalorder %s276, 7
      %s278 = scalar_select %p277, %s276, 7
      %s279 = smul.addr %s278, 8
      %s280 = scalar_lea.vmem %s7, %s279
      %s281 = smul.u32 2, %s18
      %p282 = scmp.eq.s32.totalorder %s18, 0
      // Predicated region
      $region49: #{modified_rnn_forward.1} parent=47 // pred_check
        %p283 = pneg %p282
      $region50: #{modified_rnn_forward.1} parent=47 // pred_check_branch
        %285 = sbr.rel (%p283) target = $region52
      $region51: #{modified_rnn_forward.1} parent=47 // pred_region
        %286 = vst [vmem:[#allocation2] sm:$0xff] 0.0
      $region52: #{modified_rnn_forward.1} parent=47 // pred_fallthru
        _
      %v287 = vld [vmem:[%s274] sm:$0xff]
      %v288 = vld [vmem:[%s274 + $0x8] sm:$0xff]
      %v289 = vld [vmem:[%s1] sm:$0xff]
      %v290 = vld [vmem:[%s1 + $0x8] sm:$0xf]
      %v291 = vld [vmem:[%s3] sm:$0x7]
      %v293 = vperm.slane %v291, 0
      %v294 = vperm.slane %v291, 1
      %v295 = vperm.slane %v291, 2
      %301 = vst [vmem:[#allocation1] ss:$2 sm:$0xff] %v289
      %s302 = scalar_lea.vmem [#allocation1], 16
      %303 = vst [vmem:[%s302] ss:$2 sm:$0xff] %v290
      %v304 = vld.sshfl [vmem:[#allocation1] sm:$0xff pattern:$0x75316420]
      %v305 = vld.sshfl [vmem:[#allocation1 + $0x8] sm:$0xff pattern:$0x75316420]
      %v306 = vld.sshfl [vmem:[#allocation1 + $0x10] sm:$0xff pattern:$0x75316420]
      %vm307 = vcmask 31744
      %v309 = vsel %vm307, %v287, 0
      %v312 = vsel %vm307, %v288, 0
      %vm314 = vcmask 1043456
      %v315 = vsel %vm314, %v304, 0
      %v317 = vsel %vm314, %v305, 0
      %v319 = vsel %vm314, %v306, 0
      %321 = vmatpush.msra.mxu0 0.0
      %322 = vmatpush.msra.mxu0 0.0
      %323 = vmatpush.msra.mxu0 0.0
      %324 = vmatpush.msra.mxu0 0.0
      %325 = vmatpush.msra.mxu0 0.0
      %326 = vmatpush.msra.mxu0 0.0
      %327 = vmatpush.msra.mxu0 0.0
      %328 = vmatpush.msra.mxu0 0.0
      %329 = vmatpush.msra.mxu0 0.0
      %330 = vmatpush.msra.mxu0 0.0
      %331 = vmatpush.msra.mxu0 0.0
      %332 = vmatpush.msra.mxu0 0.0
      %333 = vmatpush.msra.mxu0 0.0
      %334 = vmatpush.msra.mxu0 0.0
      %335 = vmatpush.msra.mxu0 0.0
      %336 = vmatpush.msra.mxu0 %v315
      %337 = vmatmul.f32.gmra.mxu0 %v309
      %v338 = vpop.f32.mrf.mxu0
      %v339 = vadd.f32 %v293, %v338
      %340 = vmatmul.f32.gmra.mxu0 %v312
      %v341 = vpop.f32.mrf.mxu0
      %v342 = vadd.f32 %v293, %v341
      %343 = vdwg.mxu0
      %344 = vmatpush.msra.mxu0 0.0
      %345 = vmatpush.msra.mxu0 0.0
      %346 = vmatpush.msra.mxu0 0.0
      %347 = vmatpush.msra.mxu0 0.0
      %348 = vmatpush.msra.mxu0 0.0
      %349 = vmatpush.msra.mxu0 0.0
      %350 = vmatpush.msra.mxu0 0.0
      %351 = vmatpush.msra.mxu0 0.0
      %352 = vmatpush.msra.mxu0 0.0
      %353 = vmatpush.msra.mxu0 0.0
      %354 = vmatpush.msra.mxu0 0.0
      %355 = vmatpush.msra.mxu0 0.0
      %356 = vmatpush.msra.mxu0 0.0
      %357 = vmatpush.msra.mxu0 0.0
      %358 = vmatpush.msra.mxu0 0.0
      %359 = vmatpush.msra.mxu0 %v317
      %360 = vmatmul.f32.gmra.mxu0 %v309
      %v361 = vpop.f32.mrf.mxu0
      %v362 = vadd.f32 %v294, %v361
      %363 = vmatmul.f32.gmra.mxu0 %v312
      %v364 = vpop.f32.mrf.mxu0
      %v365 = vadd.f32 %v294, %v364
      %366 = vdwg.mxu0
      %367 = vmatpush.msra.mxu0 0.0
      %368 = vmatpush.msra.mxu0 0.0
      %369 = vmatpush.msra.mxu0 0.0
      %370 = vmatpush.msra.mxu0 0.0
      %371 = vmatpush.msra.mxu0 0.0
      %372 = vmatpush.msra.mxu0 0.0
      %373 = vmatpush.msra.mxu0 0.0
      %374 = vmatpush.msra.mxu0 0.0
      %375 = vmatpush.msra.mxu0 0.0
      %376 = vmatpush.msra.mxu0 0.0
      %377 = vmatpush.msra.mxu0 0.0
      %378 = vmatpush.msra.mxu0 0.0
      %379 = vmatpush.msra.mxu0 0.0
      %380 = vmatpush.msra.mxu0 0.0
      %381 = vmatpush.msra.mxu0 0.0
      %382 = vmatpush.msra.mxu0 %v319
      %383 = vmatmul.f32.gmra.mxu0 %v309
      %v384 = vpop.f32.mrf.mxu0
      %v385 = vadd.f32 %v295, %v384
      %386 = vmatmul.f32.gmra.mxu0 %v312
      %v387 = vpop.f32.mrf.mxu0
      %v388 = vadd.f32 %v295, %v387
      %389 = vdwg.mxu0
      %390 = vst [vmem:[#allocation3] sm:$0xff] %v339
      %391 = vst [vmem:[#allocation3 + $0x8] sm:$0xff] %v362
      %392 = vst [vmem:[#allocation3 + $0x10] sm:$0xff] %v385
      %393 = vst [vmem:[#allocation3 + $0x18] sm:$0xff] %v342
      %394 = vst [vmem:[#allocation3 + $0x20] sm:$0xff] %v365
      %395 = vst [vmem:[#allocation3 + $0x28] sm:$0xff] %v388
      %v396 = vld [vmem:[%s2] sm:$0xff]
      %v397 = vld [vmem:[%s2 + $0x8] sm:$0xff]
      %v398 = vld [vmem:[%s2 + $0x10] sm:$0xff]
      %v399 = vld [vmem:[%s2 + $0x18] sm:$0xff]
      %v400 = vld [vmem:[%s2 + $0x20] sm:$0xff]
      %v401 = vld [vmem:[%s2 + $0x28] sm:$0xff]
      %v402 = vld [vmem:[%s2 + $0x30] sm:$0xff]
      %v403 = vld [vmem:[%s2 + $0x38] sm:$0xff]
      %v404 = vld [vmem:[%s2 + $0x40] sm:$0xff]
      %v405 = vld [vmem:[%s2 + $0x48] sm:$0xff]
      %v406 = vld [vmem:[%s2 + $0x50] sm:$0xff]
      %v407 = vld [vmem:[%s2 + $0x58] sm:$0xff]
      %v408 = vld [vmem:[%s2 + $0x60] sm:$0xff]
      %v409 = vld [vmem:[%s2 + $0x68] sm:$0xff]
      %v410 = vld [vmem:[%s2 + $0x70] sm:$0xff]
      %v411 = vld [vmem:[%s2 + $0x78] sm:$0xff]
      %v412 = vld [vmem:[%s2 + $0x80] sm:$0xff]
      %v413 = vld [vmem:[%s2 + $0x88] sm:$0xff]
      %v414 = vld [vmem:[%s2 + $0x90] sm:$0xff]
      %v415 = vld [vmem:[%s2 + $0x98] sm:$0xff]
      %v416 = vld [vmem:[%s2 + $0xa0] sm:$0xff]
      %v417 = vld [vmem:[%s2 + $0xa8] sm:$0xff]
      %v418 = vld [vmem:[%s2 + $0xb0] sm:$0xff]
      %v419 = vld [vmem:[%s2 + $0xb8] sm:$0xff]
      %v420 = vld [vmem:[%s2 + $0xc0] sm:$0xff]
      %v421 = vld [vmem:[%s2 + $0xc8] sm:$0xff]
      %v422 = vld [vmem:[%s2 + $0xd0] sm:$0xff]
      %v423 = vld [vmem:[%s2 + $0xd8] sm:$0xff]
      %v424 = vld [vmem:[%s2 + $0xe0] sm:$0xff]
      %v425 = vld [vmem:[%s2 + $0xe8] sm:$0xff]
      %v426 = vld [vmem:[%s2 + $0xf0] sm:$0xff]
      %v427 = vld [vmem:[%s2 + $0xf8] sm:$0xff]
      %v428 = vld [vmem:[%s2 + $0x100] sm:$0xff]
      %v429 = vld [vmem:[%s2 + $0x108] sm:$0xff]
      %v430 = vld [vmem:[%s2 + $0x110] sm:$0xff]
      %v431 = vld [vmem:[%s2 + $0x118] sm:$0xff]
      %v432 = vld [vmem:[%s2 + $0x120] sm:$0xff]
      %v433 = vld [vmem:[%s2 + $0x128] sm:$0xff]
      %v434 = vld [vmem:[%s2 + $0x130] sm:$0xff]
      %v435 = vld [vmem:[%s2 + $0x138] sm:$0xff]
      %v436 = vld [vmem:[%s2 + $0x140] sm:$0xff]
      %v437 = vld [vmem:[%s2 + $0x148] sm:$0xff]
      %v438 = vld [vmem:[%s2 + $0x150] sm:$0xff]
      %v439 = vld [vmem:[%s2 + $0x158] sm:$0xff]
      %v440 = vld [vmem:[%s2 + $0x160] sm:$0xff]
      %v441 = vld [vmem:[%s2 + $0x168] sm:$0xff]
      %v442 = vld [vmem:[%s2 + $0x170] sm:$0xff]
      %v443 = vld [vmem:[%s2 + $0x178] sm:$0xff]
      %v444 = vld [vmem:[%s4] sm:$0x1]
      %v445 = vld [vmem:[#allocation2] sm:$0xff]
      %s446 = smul.u32 0, 3
      %s447 = smul.addr %s446, 8
      %s448 = scalar_lea.vmem [#allocation3], %s447
      %v449 = vld [vmem:[%s448] sm:$0xff]
      %v450 = vld [vmem:[%s448 + $0x8] sm:$0xff]
      %v451 = vld [vmem:[%s448 + $0x10] sm:$0xff]
      %452 = vmatpush.msra.mxu0 %v441
      %453 = vmatpush.msra.mxu0 %v438
      %454 = vmatpush.msra.mxu0 %v435
      %455 = vmatpush.msra.mxu0 %v432
      %456 = vmatpush.msra.mxu0 %v429
      %457 = vmatpush.msra.mxu0 %v426
      %458 = vmatpush.msra.mxu0 %v423
      %459 = vmatpush.msra.mxu0 %v420
      %460 = vmatpush.msra.mxu0 %v417
      %461 = vmatpush.msra.mxu0 %v414
      %462 = vmatpush.msra.mxu0 %v411
      %463 = vmatpush.msra.mxu0 %v408
      %464 = vmatpush.msra.mxu0 %v405
      %465 = vmatpush.msra.mxu0 %v402
      %466 = vmatpush.msra.mxu0 %v399
      %467 = vmatpush.msra.mxu0 %v396
      %468 = vmatmul.f32.gmra.mxu0 %v445
      %v469 = vpop.f32.mrf.mxu0
      %v470 = vadd.f32 0.0, %v469
      %471 = vdwg.mxu0
      %472 = vmatpush.msra.mxu0 %v442
      %473 = vmatpush.msra.mxu0 %v439
      %474 = vmatpush.msra.mxu0 %v436
      %475 = vmatpush.msra.mxu0 %v433
      %476 = vmatpush.msra.mxu0 %v430
      %477 = vmatpush.msra.mxu0 %v427
      %478 = vmatpush.msra.mxu0 %v424
      %479 = vmatpush.msra.mxu0 %v421
      %480 = vmatpush.msra.mxu0 %v418
      %481 = vmatpush.msra.mxu0 %v415
      %482 = vmatpush.msra.mxu0 %v412
      %483 = vmatpush.msra.mxu0 %v409
      %484 = vmatpush.msra.mxu0 %v406
      %485 = vmatpush.msra.mxu0 %v403
      %486 = vmatpush.msra.mxu0 %v400
      %487 = vmatpush.msra.mxu0 %v397
      %488 = vmatmul.f32.gmra.mxu0 %v445
      %v489 = vpop.f32.mrf.mxu0
      %v490 = vadd.f32 0.0, %v489
      %491 = vdwg.mxu0
      %492 = vmatpush.msra.mxu0 %v443
      %493 = vmatpush.msra.mxu0 %v440
      %494 = vmatpush.msra.mxu0 %v437
      %495 = vmatpush.msra.mxu0 %v434
      %496 = vmatpush.msra.mxu0 %v431
      %497 = vmatpush.msra.mxu0 %v428
      %498 = vmatpush.msra.mxu0 %v425
      %499 = vmatpush.msra.mxu0 %v422
      %500 = vmatpush.msra.mxu0 %v419
      %501 = vmatpush.msra.mxu0 %v416
      %502 = vmatpush.msra.mxu0 %v413
      %503 = vmatpush.msra.mxu0 %v410
      %504 = vmatpush.msra.mxu0 %v407
      %505 = vmatpush.msra.mxu0 %v404
      %506 = vmatpush.msra.mxu0 %v401
      %507 = vmatpush.msra.mxu0 %v398
      %508 = vmatmul.f32.gmra.mxu0 %v445
      %v509 = vpop.f32.mrf.mxu0
      %v510 = vadd.f32 0.0, %v509
      %511 = vdwg.mxu0
      %v512 = vadd.f32 %v449, %v470
      %v513 = vxor.u32 %v512, 2147483648
      %v514 = vmul.f32 %v513, 1.442695
      %v515 = vpow.pop %v514
      %v516 = vadd.f32 %v515, 1.0
      %v517 = vrcp.pop %v516
      %v518 = vmul.f32 %v516, %v517
      %v519 = vsub.f32 1.0, %v518
      %v520 = vmul.f32 %v517, %v519
      %v521 = vadd.f32 %v517, %v520
      %vm522 = vweird.f32 %v516
      %vm523 = vweird.f32 %v517
      %vm524 = vmor %vm522, %vm523
      %v525 = vsel %vm524, %v517, %v521
      %v526 = vand.u32 2147483647, %v516
      %vm527 = vcmp.eq.f32.partialorder %v526, 8.507059e+37
      %v528 = vand.u32 %v516, 2147483648
      %v529 = vor.u32 1.1754944e-38, %v528
      %v530 = vsel %vm527, %v529, %v525
      %v531 = vmul.f32 1.0, %v530
      %v532 = vadd.f32 %v450, %v490
      %v533 = vxor.u32 %v532, 2147483648
      %v534 = vmul.f32 %v533, 1.442695
      %v535 = vpow.pop %v534
      %v536 = vadd.f32 %v535, 1.0
      %v537 = vrcp.pop %v536
      %v538 = vmul.f32 %v536, %v537
      %v539 = vsub.f32 1.0, %v538
      %v540 = vmul.f32 %v537, %v539
      %v541 = vadd.f32 %v537, %v540
      %vm542 = vweird.f32 %v536
      %vm543 = vweird.f32 %v537
      %vm544 = vmor %vm542, %vm543
      %v545 = vsel %vm544, %v537, %v541
      %v546 = vand.u32 2147483647, %v536
      %vm547 = vcmp.eq.f32.partialorder %v546, 8.507059e+37
      %v548 = vand.u32 %v536, 2147483648
      %v549 = vor.u32 1.1754944e-38, %v548
      %v550 = vsel %vm547, %v549, %v545
      %v551 = vmul.f32 1.0, %v550
      %v553 = vperm.slane %v444, 0
      %v555 = vadd.f32 %v510, %v553
      %v556 = vmul.f32 %v531, %v555
      %v557 = vadd.f32 %v451, %v556
      %v558 = vtanh.pop %v557
      %v559 = vsub.f32 1.0, %v551
      %v560 = vmul.f32 %v559, %v558
      %v561 = vmul.f32 %v551, %v445
      %v562 = vadd.f32 %v560, %v561
      %563 = vst [vmem:[#allocation4] sm:$0xff] %v562
      %s564 = smul.u32 1, 3
      %s565 = smul.addr %s564, 8
      %s566 = scalar_lea.vmem [#allocation3], %s565
      %v567 = vld [vmem:[%s566] sm:$0xff]
      %v568 = vld [vmem:[%s566 + $0x8] sm:$0xff]
      %v569 = vld [vmem:[%s566 + $0x10] sm:$0xff]
      %570 = vmatpush.msra.mxu0 %v441
      %571 = vmatpush.msra.mxu0 %v438
      %572 = vmatpush.msra.mxu0 %v435
      %573 = vmatpush.msra.mxu0 %v432
      %574 = vmatpush.msra.mxu0 %v429
      %575 = vmatpush.msra.mxu0 %v426
      %576 = vmatpush.msra.mxu0 %v423
      %577 = vmatpush.msra.mxu0 %v420
      %578 = vmatpush.msra.mxu0 %v417
      %579 = vmatpush.msra.mxu0 %v414
      %580 = vmatpush.msra.mxu0 %v411
      %581 = vmatpush.msra.mxu0 %v408
      %582 = vmatpush.msra.mxu0 %v405
      %583 = vmatpush.msra.mxu0 %v402
      %584 = vmatpush.msra.mxu0 %v399
      %585 = vmatpush.msra.mxu0 %v396
      %586 = vmatmul.f32.gmra.mxu0 %v562
      %v587 = vpop.f32.mrf.mxu0
      %v588 = vadd.f32 0.0, %v587
      %589 = vdwg.mxu0
      %590 = vmatpush.msra.mxu0 %v442
      %591 = vmatpush.msra.mxu0 %v439
      %592 = vmatpush.msra.mxu0 %v436
      %593 = vmatpush.msra.mxu0 %v433
      %594 = vmatpush.msra.mxu0 %v430
      %595 = vmatpush.msra.mxu0 %v427
      %596 = vmatpush.msra.mxu0 %v424
      %597 = vmatpush.msra.mxu0 %v421
      %598 = vmatpush.msra.mxu0 %v418
      %599 = vmatpush.msra.mxu0 %v415
      %600 = vmatpush.msra.mxu0 %v412
      %601 = vmatpush.msra.mxu0 %v409
      %602 = vmatpush.msra.mxu0 %v406
      %603 = vmatpush.msra.mxu0 %v403
      %604 = vmatpush.msra.mxu0 %v400
      %605 = vmatpush.msra.mxu0 %v397
      %606 = vmatmul.f32.gmra.mxu0 %v562
      %v607 = vpop.f32.mrf.mxu0
      %v608 = vadd.f32 0.0, %v607
      %609 = vdwg.mxu0
      %610 = vmatpush.msra.mxu0 %v443
      %611 = vmatpush.msra.mxu0 %v440
      %612 = vmatpush.msra.mxu0 %v437
      %613 = vmatpush.msra.mxu0 %v434
      %614 = vmatpush.msra.mxu0 %v431
      %615 = vmatpush.msra.mxu0 %v428
      %616 = vmatpush.msra.mxu0 %v425
      %617 = vmatpush.msra.mxu0 %v422
      %618 = vmatpush.msra.mxu0 %v419
      %619 = vmatpush.msra.mxu0 %v416
      %620 = vmatpush.msra.mxu0 %v413
      %621 = vmatpush.msra.mxu0 %v410
      %622 = vmatpush.msra.mxu0 %v407
      %623 = vmatpush.msra.mxu0 %v404
      %624 = vmatpush.msra.mxu0 %v401
      %625 = vmatpush.msra.mxu0 %v398
      %626 = vmatmul.f32.gmra.mxu0 %v562
      %v627 = vpop.f32.mrf.mxu0
      %v628 = vadd.f32 0.0, %v627
      %629 = vdwg.mxu0
      %v630 = vadd.f32 %v567, %v588
      %v631 = vxor.u32 %v630, 2147483648
      %v632 = vmul.f32 %v631, 1.442695
      %v633 = vpow.pop %v632
      %v634 = vadd.f32 %v633, 1.0
      %v635 = vrcp.pop %v634
      %v636 = vmul.f32 %v634, %v635
      %v637 = vsub.f32 1.0, %v636
      %v638 = vmul.f32 %v635, %v637
      %v639 = vadd.f32 %v635, %v638
      %vm640 = vweird.f32 %v634
      %vm641 = vweird.f32 %v635
      %vm642 = vmor %vm640, %vm641
      %v643 = vsel %vm642, %v635, %v639
      %v644 = vand.u32 2147483647, %v634
      %vm645 = vcmp.eq.f32.partialorder %v644, 8.507059e+37
      %v646 = vand.u32 %v634, 2147483648
      %v647 = vor.u32 1.1754944e-38, %v646
      %v648 = vsel %vm645, %v647, %v643
      %v649 = vmul.f32 1.0, %v648
      %v650 = vadd.f32 %v568, %v608
      %v651 = vxor.u32 %v650, 2147483648
      %v652 = vmul.f32 %v651, 1.442695
      %v653 = vpow.pop %v652
      %v654 = vadd.f32 %v653, 1.0
      %v655 = vrcp.pop %v654
      %v656 = vmul.f32 %v654, %v655
      %v657 = vsub.f32 1.0, %v656
      %v658 = vmul.f32 %v655, %v657
      %v659 = vadd.f32 %v655, %v658
      %vm660 = vweird.f32 %v654
      %vm661 = vweird.f32 %v655
      %vm662 = vmor %vm660, %vm661
      %v663 = vsel %vm662, %v655, %v659
      %v664 = vand.u32 2147483647, %v654
      %vm665 = vcmp.eq.f32.partialorder %v664, 8.507059e+37
      %v666 = vand.u32 %v654, 2147483648
      %v667 = vor.u32 1.1754944e-38, %v666
      %v668 = vsel %vm665, %v667, %v663
      %v669 = vmul.f32 1.0, %v668
      %v670 = vadd.f32 %v628, %v553
      %v671 = vmul.f32 %v649, %v670
      %v672 = vadd.f32 %v569, %v671
      %v673 = vtanh.pop %v672
      %v674 = vsub.f32 1.0, %v669
      %v675 = vmul.f32 %v674, %v673
      %v676 = vmul.f32 %v669, %v562
      %v677 = vadd.f32 %v675, %v676
      %s678 = scalar_lea.vmem [#allocation4], 8
      %679 = vst [vmem:[%s678] sm:$0xff] %v677
      %680 = vst [vmem:[#allocation2] sm:$0xff] %v677
      %v681 = vld [vmem:[#allocation4] sm:$0xff]
      %v682 = vld [vmem:[#allocation4 + $0x8] sm:$0xff]
      %v683 = vld [vmem:[%s5] sm:$0xff]
      %v684 = vld [vmem:[%s5 + $0x8] sm:$0xff]
      %v685 = vld [vmem:[%s5 + $0x10] sm:$0xff]
      %v686 = vld [vmem:[%s5 + $0x18] sm:$0xff]
      %v687 = vld [vmem:[%s5 + $0x20] sm:$0xff]
      %v688 = vld [vmem:[%s5 + $0x28] sm:$0xff]
      %v689 = vld [vmem:[%s5 + $0x30] sm:$0xff]
      %v690 = vld [vmem:[%s5 + $0x38] sm:$0xff]
      %v691 = vld [vmem:[%s5 + $0x40] sm:$0xff]
      %v692 = vld [vmem:[%s5 + $0x48] sm:$0xff]
      %v693 = vld [vmem:[%s5 + $0x50] sm:$0xff]
      %v694 = vld [vmem:[%s5 + $0x58] sm:$0xff]
      %v695 = vld [vmem:[%s5 + $0x60] sm:$0xff]
      %v696 = vld [vmem:[%s5 + $0x68] sm:$0xff]
      %v697 = vld [vmem:[%s5 + $0x70] sm:$0xff]
      %v698 = vld [vmem:[%s5 + $0x78] sm:$0xff]
      %v699 = vld [vmem:[%s6] sm:$0x1]
      %v701 = vperm.slane %v699, 0
      %703 = vmatpush.msra.mxu0 %v698
      %704 = vmatpush.msra.mxu0 %v697
      %705 = vmatpush.msra.mxu0 %v696
      %706 = vmatpush.msra.mxu0 %v695
      %707 = vmatpush.msra.mxu0 %v694
      %708 = vmatpush.msra.mxu0 %v693
      %709 = vmatpush.msra.mxu0 %v692
      %710 = vmatpush.msra.mxu0 %v691
      %711 = vmatpush.msra.mxu0 %v690
      %712 = vmatpush.msra.mxu0 %v689
      %713 = vmatpush.msra.mxu0 %v688
      %714 = vmatpush.msra.mxu0 %v687
      %715 = vmatpush.msra.mxu0 %v686
      %716 = vmatpush.msra.mxu0 %v685
      %717 = vmatpush.msra.mxu0 %v684
      %718 = vmatpush.msra.mxu0 %v683
      %719 = vmatmul.f32.gmra.mxu0 %v681
      %v720 = vpop.f32.mrf.mxu0
      %v721 = vadd.f32 %v701, %v720
      %722 = vmatmul.f32.gmra.mxu0 %v682
      %v723 = vpop.f32.mrf.mxu0
      %v724 = vadd.f32 %v701, %v723
      %725 = vdwg.mxu0
      %726 = vst [vmem:[%s280] sm:$0xff] %v721
      %727 = vst [vmem:[%s280 + $0x8] sm:$0xff] %v724
      %s728 = smul.u32 2, %s18
      %p729 = scmp.lt.s32.totalorder %s728, 7
      %s730 = scalar_select %p729, %s728, 7
      %s731 = smul.addr %s730, 8
      %s732 = scalar_lea.vmem %s7, %s731
      // Predicated region
      $region53: #{modified_rnn_forward.1} parent=47 // pred_check
        %p733 = pneg %p188
      $region54: #{modified_rnn_forward.1} parent=47 // pred_check_branch
        %735 = sbr.rel (%p733) target = $region56
      $region55: #{modified_rnn_forward.1} parent=47 // pred_region
        %s736 = smul.u32 2, %s18
      $region56: #{modified_rnn_forward.1} parent=47 // pred_fallthru
        _
    $region48: #{modified_rnn_forward.1} parent=5 // pred_fallthru
      _
    %p737 = scmp.le.s32.totalorder 2, %s13
    // Predicated region
    $region57: #{modified_rnn_forward.1} parent=5 // pred_check
      %p738 = pneg %p737
    $region58: #{modified_rnn_forward.1} parent=5 // pred_check_branch
      %740 = sbr.rel (%p738) target = $region60
    $region59: #{modified_rnn_forward.1} parent=5 // pred_region
      %s741 = ssub.s32 %s13, 2
      // Predicated region
      $region61: #{modified_rnn_forward.1} parent=59 // pred_check
        %p742 = pneg %p194
      $region62: #{modified_rnn_forward.1} parent=59 // pred_check_branch
        %744 = sbr.rel (%p742) target = $region64
      $region63: #{modified_rnn_forward.1} parent=59 // pred_region
        %s745 = smul.u32 2, %s19
        %p746 = scmp.lt.s32.totalorder %s745, 7
        %s747 = scalar_select %p746, %s745, 7
        %s748 = smul.addr %s747, 8
        %s749 = scalar_lea.vmem %s7, %s748
      $region64: #{modified_rnn_forward.1} parent=59 // pred_fallthru
        _
    $region60: #{modified_rnn_forward.1} parent=5 // pred_fallthru
      _
  $region6: #{modified_rnn_forward.1} parent=0 // loop_footer
    %s17 = sadd.s32 1, %s13
  $region7: #{modified_rnn_forward.1} parent=0 // loop_footer_branch
    %12 = sbr.rel target = $region3
  $region8: #{modified_rnn_forward.1} parent=0 // loop_exit
    _

</llo_original>
